<compile_context>
chip_gen: v6e
topology: v6e:2x2x1
jax: 0.10.0
libtpu: 0.0.40
codegen_flags: <defaults>
</compile_context>

<pallas_src>
import jax
import jax.numpy as jnp
import numpy as np
from jax.experimental import pallas as pl
from jax.experimental.pallas import tpu as pltpu


def _locked_dropout_kernel(x_ref, mask_ref, o_ref):
    # x_ref: (seq_tile, B*H), mask_ref: (1, B*H) -- broadcast over the seq
    # tile ("locked" mask) and multiply in the native dtype.
    o_ref[...] = x_ref[...] * mask_ref[...]


def _block_budget_bytes():
    # Per-generation sizing: 2 input + 2 output double-buffered blocks plus
    # the mask must stay inside scoped VMEM on every generation
    # (v5e default 16 MiB scoped, v7x 64 MiB physical / 32 MiB scoped).
    try:
        cap = pltpu.get_tpu_info().vmem_capacity_bytes
    except Exception:
        cap = 64 * 1024 * 1024
    return max(512 * 1024, min(2 * 1024 * 1024, cap // 32))


def _choose_seq_tile(seq_len, row_bytes, budget_bytes):
    """Largest seq tile (multiple of 8, or the full seq) fitting the budget."""
    max_rows = max(1, budget_bytes // max(row_bytes, 1))
    if seq_len <= max_rows:
        return seq_len
    return max(8, (max_rows // 8) * 8)


def locked_dropout(x, seed, dropout=0.5, training=True, *, seq_tile=None):
    """Pallas LockedDropout. x: (L, B, H). Returns same shape/dtype."""
    if not training or not dropout:
        return x

    L, B, H = x.shape
    BH = B * H
    keep_prob = 1.0 - float(dropout)

    # Sample the locked (1, B*H) mask once with plain JAX RNG (outside the
    # grid) and pass it as a resident read-only input to the kernel.
    key = jax.random.PRNGKey(seed)
    keep = jax.random.bernoulli(key, p=keep_prob, shape=(1, BH))
    mask = (keep.astype(jnp.float32) * (1.0 / keep_prob)).astype(x.dtype)

    x2 = x.reshape(L, BH)  # lane-dense layout: last dim is B*H

    if seq_tile is None:
        seq_tile = _choose_seq_tile(L, BH * x2.dtype.itemsize, _block_budget_bytes())
    seq_tile = min(seq_tile, L)
    grid = (pl.cdiv(L, seq_tile),)

    # NOTE: for very large B*H one could add a second grid axis over the
    # flattened hidden dim to keep per-block VMEM bounded without shrinking
    # the seq tile; unnecessary at these sizes.
    out2 = pl.pallas_call(
        _locked_dropout_kernel,
        out_shape=jax.ShapeDtypeStruct((L, BH), x.dtype),
        grid=grid,
        in_specs=[
            pl.BlockSpec((seq_tile, BH), lambda i: (i, 0)),
            pl.BlockSpec((1, BH), lambda i: (0, 0)),  # mask resident for all steps
        ],
        out_specs=pl.BlockSpec((seq_tile, BH), lambda i: (i, 0)),
        compiler_params=pltpu.CompilerParams(
            # Mask is a read-only input -> seq axis is embarrassingly parallel
            # (lets v7x shard the stream across both TensorCores).
            dimension_semantics=("parallel",),
        ),
    )(x2, mask)

    return out2.reshape(L, B, H)


if __name__ == "__main__":
    key = jax.random.PRNGKey(0)
    L, B, H = 8, 4, 32  # seq=8, batch=4, hidden=32
    x = jax.random.normal(key, (L, B, H), dtype=jnp.float32)
    dropout = 0.5
    keep_prob = 1.0 - dropout

    out = locked_dropout(x, seed=42, dropout=dropout, training=True)
    out = jax.block_until_ready(out)

    x_np = np.asarray(x)
    out_np = np.asarray(out)

    # Recover the effective mask (x is Gaussian -> nonzero almost surely).
    ratio = out_np / x_np
    # 1) mask values are exactly 0 or 1/keep_prob
    ok_vals = np.isclose(ratio, 0.0, atol=1e-5) | np.isclose(
        ratio, 1.0 / keep_prob, atol=1e-4
    )
    assert np.all(ok_vals), "mask values must be 0 or 1/(1-p)"
    # 2) mask is locked (identical) across the sequence dimension
    assert np.allclose(ratio, ratio[0:1], atol=1e-4), "mask must be locked over seq"
    # 3) eval mode / dropout==0 are identity (matches PyTorch early return)
    ident = locked_dropout(x, seed=0, dropout=dropout, training=False)
    assert np.array_equal(np.asarray(ident), x_np)
    ident2 = locked_dropout(x, seed=0, dropout=0.0, training=True)
    assert np.array_equal(np.asarray(ident2), x_np)

    print("KERNEL_OK")
</pallas_src>

<mosaic_0001>
module attributes {stable_mosaic.version = 11 : i64} {
  func.func @_locked_dropout_kernel(%arg0: i32, %arg1: memref<8x128xf32, #tpu.memory_space<vmem>>, %arg2: memref<1x128xf32, #tpu.memory_space<vmem>>, %arg3: memref<8x128xf32, #tpu.memory_space<vmem>>) attributes {dimension_semantics = [#tpu.dimension_semantics<parallel>], iteration_bounds = array<i64: 1>, scalar_prefetch = 0 : i64, scratch_operands = 0 : i64, tpu.core_type = #tpu.core_type<tc>, window_params = [{transform_indices = @transform_0, window_bounds = array<i64: 8, 128>}, {pipeline_mode = #tpu.pipeline_mode<synchronous>, transform_indices = @transform_1, window_bounds = array<i64: 1, 128>}, {transform_indices = @transform_2, window_bounds = array<i64: 8, 128>}]} {
    %c0 = arith.constant 0 : index
    %c0_0 = arith.constant 0 : index
    %0 = vector.load %arg1[%c0, %c0_0] : memref<8x128xf32, #tpu.memory_space<vmem>>, vector<8x128xf32>
    %c0_1 = arith.constant 0 : index
    %c0_2 = arith.constant 0 : index
    %1 = vector.load %arg2[%c0_1, %c0_2] : memref<1x128xf32, #tpu.memory_space<vmem>>, vector<1x128xf32>
    %2 = vector.broadcast %1 : vector<1x128xf32> to vector<8x128xf32>
    %3 = arith.mulf %0, %2 : vector<8x128xf32>
    %c0_3 = arith.constant 0 : index
    %c0_4 = arith.constant 0 : index
    %4 = vector.load %arg3[%c0_3, %c0_4] : memref<8x128xf32, #tpu.memory_space<vmem>>, vector<8x128xf32>
    tpu.vector_store %arg3[%c0_3, %c0_4], %3 {strides = array<i32>} : memref<8x128xf32, #tpu.memory_space<vmem>>, vector<8x128xf32>,
    return
  }
  func.func @transform_0(%arg0: i32) -> (i32, i32) {
    %c0_i32 = arith.constant 0 : i32
    %c0_i32_0 = arith.constant 0 : i32
    return %arg0, %c0_i32 : i32, i32
  }
  func.func @transform_1(%arg0: i32) -> (i32, i32) {
    %c0_i32 = arith.constant 0 : i32
    %c0_i32_0 = arith.constant 0 : i32
    %c0_i32_1 = arith.constant 0 : i32
    return %c0_i32, %c0_i32_0 : i32, i32
  }
  func.func @transform_2(%arg0: i32) -> (i32, i32) {
    %c0_i32 = arith.constant 0 : i32
    %c0_i32_0 = arith.constant 0 : i32
    return %arg0, %c0_i32 : i32, i32
  }
}

</mosaic_0001>

<llo_original>
// kernel: tpu_custom_call.1
$region0: #{tpu_custom_call.1}
  #allocation0 [shape = 'u32[]', space=smem, size = 0x4, offset = 0x4, fixed_abs, tag = 'smem constant byte address 0x4 - core index']
  #allocation1 [shape = 'u32[144,128]{1,0:T(1,128)}', space=vmem, size = 0x12000, scoped, tag = 'internal scratch']
  %s0 = inlined_call_operand.hbm [shape: f32[8,128], index: 0, kind: input, shape index: {}]
  %s1 = inlined_call_operand.vmem [shape: f32[1,128], index: 1, kind: input, shape index: {}]
  %s2 = inlined_call_operand.hbm [shape: f32[8,128], index: 2, kind: output, shape index: {}]
  %s3 = sld [smem:[#allocation0]]
  $region22: #{tpu_custom_call.1} parent=0
    _
  %s5 = ssub.s32 1, %s3
  %s6 = scalar_select 0, %s5, %s3
  $region1: #{tpu_custom_call.1} parent=0
    #allocation2 [shape = 'u8[4096]{0}', space=vmem, size = 0x1000, scoped, tag = 'input window, operand 0, single buffered']
    #allocation3 [shape = 's32[1]{0}', space=sflag, size = 0x4, scoped, tag = 'scoped memory for tpu_custom_call.1']
    #allocation4 [shape = 's32[1]{0}', space=sflag, size = 0x4, scoped, tag = 'scoped memory for tpu_custom_call.1']
    #allocation5 [shape = 'u8[4096]{0}', space=vmem, size = 0x1000, scoped, tag = 'output window, operand 0, single buffered']
    %7 = vsyncpa [#allocation3], 0
    %8 = vsyncpa [#allocation4], 0
    // Predicated region
    $region2: #{tpu_custom_call.1} parent=1 // pred_check
      _
    $region3: #{tpu_custom_call.1} parent=1 // pred_check_branch
      %10 = sbr.rel (0) target = $region5
    $region4: #{tpu_custom_call.1} parent=1 // pred_region
      %s12 = ssub.s32 128, 128
      %13 = vsyncadd [#allocation3], %s12
      %s15 = sshll.u32 [#allocation2], 4
      %s16 = int_to_ptr.vmem [resolvable:$true] %s15
      %18 = dma.hbm_to_vmem [thread:$0]  %s0, 128, %s16, [#allocation3]
    $region5: #{tpu_custom_call.1} parent=1 // pred_fallthru
      _
    // Predicated region
    $region6: #{tpu_custom_call.1} parent=1 // pred_check
      _
    $region7: #{tpu_custom_call.1} parent=1 // pred_check_branch
      %20 = sbr.rel (0) target = $region9
    $region8: #{tpu_custom_call.1} parent=1 // pred_region
      _
    $region9: #{tpu_custom_call.1} parent=1 // pred_fallthru
      _
    // Predicated region
    $region10: #{tpu_custom_call.1} parent=1 // pred_check
      _
    $region11: #{tpu_custom_call.1} parent=1 // pred_check_branch
      %22 = sbr.rel (0) target = $region13
    $region12: #{tpu_custom_call.1} parent=1 // pred_region
      %23 = dma.done [#allocation3], 128
    $region13: #{tpu_custom_call.1} parent=1 // pred_fallthru
      _
    %v24 = vld [vmem:[#allocation2] sm:$0xff]
    %v25 = vld [vmem:[%s1] sm:$0x1]
    %v27 = vlaneseq
    %v28 = vshrl.u32 %v27, 7
    %v29 = vsub.s32 0, %v28
    %v30 = vrot.slane %v25, %v29
    %v32 = vmul.f32 %v24, %v30
    %33 = vst [vmem:[#allocation5] sm:$0xff] %v32
    // Predicated region
    $region14: #{tpu_custom_call.1} parent=1 // pred_check
      _
    $region15: #{tpu_custom_call.1} parent=1 // pred_check_branch
      %35 = sbr.rel (0) target = $region17
    $region16: #{tpu_custom_call.1} parent=1 // pred_region
      %s37 = ssub.s32 128, 128
      %38 = vsyncadd [#allocation4], %s37
      %s40 = sshll.u32 [#allocation5], 4
      %s41 = int_to_ptr.vmem [resolvable:$true] %s40
      %43 = dma.vmem_to_hbm [thread:$0]  %s41, 128, %s2, [#allocation4]
    $region17: #{tpu_custom_call.1} parent=1 // pred_fallthru
      _
    // Predicated region
    $region18: #{tpu_custom_call.1} parent=1 // pred_check
      _
    $region19: #{tpu_custom_call.1} parent=1 // pred_check_branch
      %45 = sbr.rel (0) target = $region21
    $region20: #{tpu_custom_call.1} parent=1 // pred_region
      %46 = dma.done [#allocation4], 128
    $region21: #{tpu_custom_call.1} parent=1 // pred_fallthru
      _
    %47 = vsyncpa [#allocation3], 1
    %48 = vsyncpa [#allocation4], 1

</llo_original>
